<compile_context>
chip_gen: v5e
topology: v5e:2x2
jax: 0.10.0
libtpu: 0.0.40
codegen_flags: <defaults>
</compile_context>

<pallas_src>
import math
from functools import partial

import jax
import jax.numpy as jnp
from jax.experimental import pallas as pl
from jax.experimental.pallas import tpu as pltpu

_LN_EPS = 1e-5      # matches nn.LayerNorm default
_NEG_INF = -1e30    # additive mask value (safe for online softmax with causal ordering)


def _vmem_limit_bytes():
    """Use more of the 128 MiB VMEM on v5e/v6e, stay conservative on v7x (64 MiB)."""
    try:
        cap = pltpu.get_tpu_info().vmem_capacity_bytes
    except Exception:
        cap = 64 * 1024 * 1024
    return int(min(100 * 1024 * 1024, cap * 3 // 4))


_VMEM_LIMIT = _vmem_limit_bytes()


def _pick_tile(dim, max_tile, align):
    """Largest tile <= max_tile that is a multiple of `align` and divides `dim`;
    a dim <= max_tile uses the full dim (always a legal block shape)."""
    if dim <= max_tile:
        return dim
    t = (max_tile // align) * align
    while t >= align:
        if dim % t == 0:
            return t
        t -= align
    # TODO(synk): pad to the next (8,128) multiple (masked remainder tile) instead of failing.
    raise ValueError(f"no {align}-aligned tile <= {max_tile} divides dim={dim}")


def _heads_per_group(num_heads, dh):
    """Smallest head group whose lane width (hpg*dh) is a multiple of 128, else all heads."""
    for hpg in range(1, num_heads + 1):
        if num_heads % hpg == 0 and (hpg * dh) % 128 == 0:
            return hpg
    return num_heads


# ----------------------------- kernel: tiled matmul + bias (+ReLU) -----------------------------

def _matmul_bias_kernel(x_ref, w_ref, b_ref, o_ref, acc_ref, *, activation):
    @pl.when(pl.program_id(2) == 0)
    def _():
        acc_ref[...] = jnp.zeros_like(acc_ref)

    acc_ref[...] += jnp.dot(x_ref[...], w_ref[...], preferred_element_type=jnp.float32)

    @pl.when(pl.program_id(2) == pl.num_programs(2) - 1)
    def _():
        y = acc_ref[...] + b_ref[...]
        if activation == "relu":
            y = jnp.maximum(y, 0.0)
        o_ref[...] = y.astype(o_ref.dtype)


def linear(x2d, w_bf16, b, activation=None):
    """x2d: [M,K] bf16, w_bf16: [K,N] bf16, b: [N] f32 -> [M,N] bf16 (optionally ReLU)."""
    M, K = x2d.shape
    N = w_bf16.shape[1]
    tm = _pick_tile(M, 256, 8)
    tk = _pick_tile(K, 512, 128)
    tn = _pick_tile(N, 1024, 128)
    flops = 2 * M * N * K
    bytes_accessed = M * K * 2 + K * N * 2 + N * 4 + M * N * 2
    # TODO(synk): on v5e consider pipeline_mode=pl.Buffered(3) on the weight spec if DMA exposed.
    return pl.pallas_call(
        partial(_matmul_bias_kernel, activation=activation),
        out_shape=jax.ShapeDtypeStruct((M, N), jnp.bfloat16),
        grid=(M // tm, N // tn, K // tk),
        in_specs=[pl.BlockSpec((tm, tk), lambda i, j, k: (i, k)),
                  pl.BlockSpec((tk, tn), lambda i, j, k: (k, j)),
                  pl.BlockSpec((1, tn), lambda i, j, k: (0, j))],
        out_specs=pl.BlockSpec((tm, tn), lambda i, j, k: (i, j)),
        scratch_shapes=[pltpu.VMEM((tm, tn), jnp.float32)],
        compiler_params=pltpu.CompilerParams(
            dimension_semantics=("parallel", "parallel", "arbitrary"),
            vmem_limit_bytes=_VMEM_LIMIT),
        cost_estimate=pl.CostEstimate(flops=flops, transcendentals=0,
                                      bytes_accessed=bytes_accessed),
    )(x2d, w_bf16, b.reshape(1, N))


# ----------------- kernel: tiled matmul + bias + residual-add + LayerNorm (fused epilogue) -----------------

def _matmul_bias_add_ln_kernel(x_ref, w_ref, b_ref, r_ref, g_ref, bb_ref, o_ref, acc_ref):
    @pl.when(pl.program_id(1) == 0)
    def _():
        acc_ref[...] = jnp.zeros_like(acc_ref)

    acc_ref[...] += jnp.dot(x_ref[...], w_ref[...], preferred_element_type=jnp.float32)

    @pl.when(pl.program_id(1) == pl.num_programs(1) - 1)
    def _():
        y = acc_ref[...] + b_ref[...] + r_ref[...].astype(jnp.float32)   # bias + residual
        mu = jnp.mean(y, axis=-1, keepdims=True)
        var = jnp.mean((y - mu) ** 2, axis=-1, keepdims=True)
        yn = (y - mu) * jax.lax.rsqrt(var + _LN_EPS)
        o_ref[...] = (yn * g_ref[...] + bb_ref[...]).astype(o_ref.dtype)


def linear_add_layernorm(x2d, w_bf16, b, res2d_bf16, gamma, beta):
    """LN( x2d @ w + b + res ) * gamma + beta over full rows -> [M,N] bf16."""
    M, K = x2d.shape
    N = w_bf16.shape[1]
    # Conservative tiles (full-N blocks are resident) so the budget also fits v7x's 64 MiB VMEM.
    tm = _pick_tile(M, 128, 8)
    tk = _pick_tile(K, 256, 128)
    flops = 2 * M * N * K + 8 * M * N
    bytes_accessed = M * K * 2 + K * N * 2 + 3 * N * 4 + M * N * 2 + M * N * 2
    return pl.pallas_call(
        _matmul_bias_add_ln_kernel,
        out_shape=jax.ShapeDtypeStruct((M, N), jnp.bfloat16),
        grid=(M // tm, K // tk),
        in_specs=[pl.BlockSpec((tm, tk), lambda i, k: (i, k)),
                  pl.BlockSpec((tk, N), lambda i, k: (k, 0)),
                  pl.BlockSpec((1, N), lambda i, k: (0, 0)),
                  pl.BlockSpec((tm, N), lambda i, k: (i, 0)),     # residual (bf16)
                  pl.BlockSpec((1, N), lambda i, k: (0, 0)),
                  pl.BlockSpec((1, N), lambda i, k: (0, 0))],
        out_specs=pl.BlockSpec((tm, N), lambda i, k: (i, 0)),
        scratch_shapes=[pltpu.VMEM((tm, N), jnp.float32)],
        compiler_params=pltpu.CompilerParams(
            dimension_semantics=("parallel", "arbitrary"),
            vmem_limit_bytes=_VMEM_LIMIT),
        cost_estimate=pl.CostEstimate(flops=flops, transcendentals=M,
                                      bytes_accessed=bytes_accessed),
    )(x2d, w_bf16, b.reshape(1, N), res2d_bf16, gamma.reshape(1, N), beta.reshape(1, N))


# ----------------------------- kernel: flash attention (merged-head layout) -----------------------------

def _flash_attn_kernel(q_ref, k_ref, v_ref, o_ref, m_sc, l_sc, acc_sc,
                       *, hpg, dh, causal, tq, tk):
    j = pl.program_id(3)

    @pl.when(j == 0)
    def _():
        m_sc[...] = jnp.full_like(m_sc, -jnp.inf)
        l_sc[...] = jnp.zeros_like(l_sc)
        acc_sc[...] = jnp.zeros_like(acc_sc)

    q = q_ref[0]        # (tq, hpg*dh) bf16   (1/sqrt(Dh) already folded into Wq)
    k = k_ref[0]        # (tk, hpg*dh) bf16
    v = v_ref[0]        # (tk, hpg*dh) bf16

    if causal:
        row = pl.program_id(2) * tq + jax.lax.broadcasted_iota(jnp.int32, (tq, tk), 0)
        col = j * tk + jax.lax.broadcasted_iota(jnp.int32, (tq, tk), 1)
        keep = row >= col

    for h in range(hpg):                       # static unroll over heads of this group
        sl = slice(h * dh, (h + 1) * dh)
        s = jax.lax.dot_general(q[:, sl], k[:, sl], (((1,), (1,)), ((), ())),
                                preferred_element_type=jnp.float32)        # (tq, tk)
        if causal:
            s = jnp.where(keep, s, _NEG_INF)
        m_prev = m_sc[h]                                                    # (tq, 1)
        m_new = jnp.maximum(m_prev, jnp.max(s, axis=-1, keepdims=True))
        alpha = jnp.exp(m_prev - m_new)
        p = jnp.exp(s - m_new)
        l_sc[h] = alpha * l_sc[h] + jnp.sum(p, axis=-1, keepdims=True)
        acc_sc[h] = alpha * acc_sc[h] + jax.lax.dot_general(
            p.astype(jnp.bfloat16), v[:, sl], (((1,), (0,)), ((), ())),
            preferred_element_type=jnp.float32)                             # (tq, dh)
        m_sc[h] = m_new

    @pl.when(j == pl.num_programs(3) - 1)
    def _():
        outs = [acc_sc[h] / l_sc[h] for h in range(hpg)]     # exact divide (no approx recip)
        o_ref[0] = jnp.concatenate(outs, axis=-1).astype(o_ref.dtype)


def sdpa(q_arr, k_arr, v_arr, *, num_heads, dh, q_col, k_col, v_col, causal):
    """Merged-head attention.  q_arr: [B,Sq,*], k_arr/v_arr: [B,Sk,*] (possibly the fused
    QKV / KV tensor); q_col/k_col/v_col are the column offsets of Q/K/V inside the last dim.
    Output: [B,Sq,D] bf16, heads contiguous in the last dim."""
    B, Sq, _ = q_arr.shape
    Sk = k_arr.shape[1]
    D = num_heads * dh
    hpg = _heads_per_group(num_heads, dh)
    hg = num_heads // hpg
    hd = hpg * dh
    assert q_col % hd == 0 and k_col % hd == 0 and v_col % hd == 0
    qo, ko, vo = q_col // hd, k_col // hd, v_col // hd

    tq = _pick_tile(Sq, 128, 8)
    tk = _pick_tile(Sk, 256, 8)

    flops = 4 * B * num_heads * Sq * Sk * dh
    transc = B * num_heads * Sq * (Sk + Sk // tk)
    bytes_accessed = 2 * (B * Sq * D + 2 * B * Sk * D + B * Sq * D)

    return pl.pallas_call(
        partial(_flash_attn_kernel, hpg=hpg, dh=dh, causal=causal, tq=tq, tk=tk),
        out_shape=jax.ShapeDtypeStruct((B, Sq, D), jnp.bfloat16),
        grid=(B, hg, Sq // tq, Sk // tk),
        in_specs=[pl.BlockSpec((1, tq, hd), lambda b, g, i, j: (b, i, qo + g)),
                  pl.BlockSpec((1, tk, hd), lambda b, g, i, j: (b, j, ko + g)),
                  pl.BlockSpec((1, tk, hd), lambda b, g, i, j: (b, j, vo + g))],
        out_specs=pl.BlockSpec((1, tq, hd), lambda b, g, i, j: (b, i, g)),
        scratch_shapes=[pltpu.VMEM((hpg, tq, 1), jnp.float32),
                        pltpu.VMEM((hpg, tq, 1), jnp.float32),
                        pltpu.VMEM((hpg, tq, dh), jnp.float32)],
        compiler_params=pltpu.CompilerParams(
            dimension_semantics=("parallel", "parallel", "parallel", "arbitrary"),
            vmem_limit_bytes=_VMEM_LIMIT),
        cost_estimate=pl.CostEstimate(flops=flops, transcendentals=transc,
                                      bytes_accessed=bytes_accessed),
    )(q_arr, k_arr, v_arr)


def _attn_operand(arr3, col_off, width, num_heads, dh):
    """Keep the fused tensor (zero-copy) when head-group blocks are 128-lane aligned;
    otherwise slice a contiguous [B,S,width] view so the block equals the full last dim."""
    hpg = _heads_per_group(num_heads, dh)
    if (hpg * dh) % 128 == 0:
        return arr3, col_off
    return jax.lax.slice_in_dim(arr3, col_off, col_off + width, axis=2), 0


# ----------------------------- model glue (plain JAX, reshapes only) -----------------------------

def decoder_layer(x2, enc2, p, B, S, Se, num_heads, dh):
    D = num_heads * dh

    # ---- masked self-attention (fused Q|K|V projection, causal mask generated in-kernel) ----
    sa = p["self_attn"]
    qkv = linear(x2, sa["wqkv"], sa["bqkv"]).reshape(B, S, 3 * D)
    q_a, q_off = _attn_operand(qkv, 0, D, num_heads, dh)
    k_a, k_off = _attn_operand(qkv, D, D, num_heads, dh)
    v_a, v_off = _attn_operand(qkv, 2 * D, D, num_heads, dh)
    attn = sdpa(q_a, k_a, v_a, num_heads=num_heads, dh=dh,
                q_col=q_off, k_col=k_off, v_col=v_off, causal=True)
    # out-projection + dropout(identity) + residual + LayerNorm fused in one kernel
    x2 = linear_add_layernorm(attn.reshape(B * S, D), sa["wo"], sa["bo"],
                              x2, p["ln1_g"], p["ln1_b"])

    # ---- cross-attention (fused K|V projection over encoder output, no mask) ----
    ca = p["cross_attn"]
    q = linear(x2, ca["wq"], ca["bq"]).reshape(B, S, D)
    kv = linear(enc2, ca["wkv"], ca["bkv"]).reshape(B, Se, 2 * D)
    k_a, k_off = _attn_operand(kv, 0, D, num_heads, dh)
    v_a, v_off = _attn_operand(kv, D, D, num_heads, dh)
    attn = sdpa(q, k_a, v_a, num_heads=num_heads, dh=dh,
                q_col=0, k_col=k_off, v_col=v_off, causal=False)
    x2 = linear_add_layernorm(attn.reshape(B * S, D), ca["wo"], ca["bo"],
                              x2, p["ln2_g"], p["ln2_b"])

    # ---- position-wise FFN ----
    h = linear(x2, p["ffn_w1"], p["ffn_b1"], activation="relu")
    x2 = linear_add_layernorm(h, p["ffn_w2"], p["ffn_b2"],
                              x2, p["ln3_g"], p["ln3_b"])
    return x2


def sinusoidal_pos_encoding(max_len, d_model):
    pos = jnp.arange(max_len, dtype=jnp.float32)[:, None]
    i = jnp.arange(0, d_model, 2, dtype=jnp.float32)
    angle = pos / jnp.power(10000.0, i / d_model)
    pe = jnp.zeros((max_len, d_model), jnp.float32)
    pe = pe.at[:, 0::2].set(jnp.sin(angle))
    pe = pe.at[:, 1::2].set(jnp.cos(angle))
    return pe


def decoder_forward(tokens, enc_out, params, num_heads):
    # embedding lookup (padding_idx row zeroed) + positional encoding
    emb = jnp.take(params["tok_emb"], tokens, axis=0)                 # [B, S, D] f32
    B, S = tokens.shape
    D = emb.shape[-1]
    x = emb + params["pos_enc"][:S][None, :, :]
    # TODO(synk): nn.Dropout implemented as identity (deterministic / eval-mode).
    # TODO(synk): arbitrary user x_mask/src_mask not supported; self-attn uses an in-kernel
    #             causal mask, cross-attn is unmasked (src_mask=None), the standard decoder use.
    x2 = x.reshape(B * S, D).astype(jnp.bfloat16)
    Se = enc_out.shape[1]
    enc2 = enc_out.reshape(B * Se, D).astype(jnp.bfloat16)
    dh = D // num_heads
    for p in params["blocks"]:
        x2 = decoder_layer(x2, enc2, p, B, S, Se, num_heads, dh)
    return x2.reshape(B, S, D).astype(jnp.float32)


# ----------------------------- parameter init -----------------------------

def init_params(key, num_blocks, d_model, vocab_size, max_len, num_heads,
                expand_factor, padding_idx=0):
    d_ff = expand_factor * d_model
    dh = d_model // num_heads
    scale = 1.0 / math.sqrt(dh)                 # folded into the Q projection (zero runtime cost)
    keys = jax.random.split(key, 1 + num_blocks)
    tok = jax.random.normal(keys[0], (vocab_size, d_model), jnp.float32) * 0.02
    tok = tok.at[padding_idx].set(0.0)

    def lin_w(k, din, dout):
        return jax.random.normal(k, (din, dout), jnp.float32) * 0.02

    def self_attn_params(kset):
        wq, wk, wv = (lin_w(kset[i], d_model, d_model) for i in range(3))
        wq = wq * scale
        return dict(
            wqkv=jnp.concatenate([wq, wk, wv], axis=1).astype(jnp.bfloat16),
            bqkv=jnp.zeros((3 * d_model,), jnp.float32),
            wo=lin_w(kset[3], d_model, d_model).astype(jnp.bfloat16),
            bo=jnp.zeros((d_model,), jnp.float32))

    def cross_attn_params(kset):
        wq, wk, wv = (lin_w(kset[i], d_model, d_model) for i in range(3))
        wq = wq * scale
        return dict(
            wq=wq.astype(jnp.bfloat16), bq=jnp.zeros((d_model,), jnp.float32),
            wkv=jnp.concatenate([wk, wv], axis=1).astype(jnp.bfloat16),
            bkv=jnp.zeros((2 * d_model,), jnp.float32),
            wo=lin_w(kset[3], d_model, d_model).astype(jnp.bfloat16),
            bo=jnp.zeros((d_model,), jnp.float32))

    blocks = []
    for bi in range(num_blocks):
        bk = jax.random.split(keys[1 + bi], 10)
        blocks.append(dict(
            self_attn=self_attn_params(bk[0:4]),
            cross_attn=cross_attn_params(bk[4:8]),
            ffn_w1=lin_w(bk[8], d_model, d_ff).astype(jnp.bfloat16),
            ffn_b1=jnp.zeros((d_ff,), jnp.float32),
            ffn_w2=lin_w(bk[9], d_ff, d_model).astype(jnp.bfloat16),
            ffn_b2=jnp.zeros((d_model,), jnp.float32),
            ln1_g=jnp.ones((d_model,), jnp.float32), ln1_b=jnp.zeros((d_model,), jnp.float32),
            ln2_g=jnp.ones((d_model,), jnp.float32), ln2_b=jnp.zeros((d_model,), jnp.float32),
            ln3_g=jnp.ones((d_model,), jnp.float32), ln3_b=jnp.zeros((d_model,), jnp.float32)))

    return dict(tok_emb=tok,
                pos_enc=sinusoidal_pos_encoding(max_len, d_model),
                blocks=blocks)


# ----------------------------- main -----------------------------

if __name__ == "__main__":
    B, S, S_enc = 2, 8, 8
    d_model, num_heads, num_blocks = 32, 4, 2
    vocab_size, max_len, expand = 50, 16, 4

    key = jax.random.PRNGKey(0)
    k_param, k_tok, k_enc = jax.random.split(key, 3)

    params = init_params(k_param, num_blocks, d_model, vocab_size, max_len,
                         num_heads, expand, padding_idx=0)

    tokens = jax.random.randint(k_tok, (B, S), 0, vocab_size).astype(jnp.int32)
    enc_out = jax.random.normal(k_enc, (B, S_enc, d_model), jnp.float32)

    out = decoder_forward(tokens, enc_out, params, num_heads)
    jax.block_until_ready(out)
    assert out.shape == (B, S, d_model)
    assert bool(jnp.all(jnp.isfinite(out)))
    print("KERNEL_OK")
</pallas_src>

<mosaic_0001>
module attributes {stable_mosaic.version = 11 : i64} {
  func.func @_matmul_bias_kernel(%arg0: i32, %arg1: i32, %arg2: i32, %arg3: memref<16x32xbf16, #tpu.memory_space<vmem>>, %arg4: memref<32x96xbf16, #tpu.memory_space<vmem>>, %arg5: memref<1x96xf32, #tpu.memory_space<vmem>>, %arg6: memref<16x96xbf16, #tpu.memory_space<vmem>>, %arg7: memref<16x96xf32, #tpu.memory_space<vmem>>) attributes {dimension_semantics = [#tpu.dimension_semantics<parallel>, #tpu.dimension_semantics<parallel>, #tpu.dimension_semantics<arbitrary>], iteration_bounds = array<i64: 1, 1, 1>, scalar_prefetch = 0 : i64, scratch_operands = 1 : i64, tpu.core_type = #tpu.core_type<tc>, window_params = [{transform_indices = @transform_0, window_bounds = array<i64: 16, 32>}, {transform_indices = @transform_1, window_bounds = array<i64: 32, 96>}, {transform_indices = @transform_2, window_bounds = array<i64: 1, 96>}, {transform_indices = @transform_3, window_bounds = array<i64: 16, 96>}]} {
    %c0_i32 = arith.constant 0 : i32
    %0 = arith.cmpi eq, %arg2, %c0_i32 : i32
    %1 = arith.extui %0 : i1 to i32
    %c0_i32_0 = arith.constant 0 : i32
    %2 = arith.cmpi ne, %1, %c0_i32_0 : i32
    scf.if %2 {
      %cst_10 = arith.constant 0.000000e+00 : f32
      %12 = vector.broadcast %cst_10 : f32 to vector<16x96xf32>
      %c0_11 = arith.constant 0 : index
      %c0_12 = arith.constant 0 : index
      %13 = vector.load %arg7[%c0_11, %c0_12] : memref<16x96xf32, #tpu.memory_space<vmem>>, vector<16x96xf32>
      tpu.vector_store %arg7[%c0_11, %c0_12], %12 {strides = array<i32>} : memref<16x96xf32, #tpu.memory_space<vmem>>, vector<16x96xf32>,
    } else {
    }
    %c0 = arith.constant 0 : index
    %c0_1 = arith.constant 0 : index
    %3 = vector.load %arg7[%c0, %c0_1] : memref<16x96xf32, #tpu.memory_space<vmem>>, vector<16x96xf32>
    %c0_2 = arith.constant 0 : index
    %c0_3 = arith.constant 0 : index
    %4 = vector.load %arg3[%c0_2, %c0_3] : memref<16x32xbf16, #tpu.memory_space<vmem>>, vector<16x32xbf16>
    %c0_4 = arith.constant 0 : index
    %c0_5 = arith.constant 0 : index
    %5 = vector.load %arg4[%c0_4, %c0_5] : memref<32x96xbf16, #tpu.memory_space<vmem>>, vector<32x96xbf16>
    %cst = arith.constant dense<0.000000e+00> : vector<16x96xf32>
    %6 = tpu.matmul %4, %5, %cst {dimension_numbers = #tpu.dot_dimension_numbers<[1], [0], [0], [1], [0, 0, 1, 1], [], []>} : vector<16x32xbf16>, vector<32x96xbf16>, vector<16x96xf32> -> vector<16x96xf32>
    %7 = arith.addf %3, %6 : vector<16x96xf32>
    %c0_6 = arith.constant 0 : index
    %c0_7 = arith.constant 0 : index
    %8 = vector.load %arg7[%c0_6, %c0_7] : memref<16x96xf32, #tpu.memory_space<vmem>>, vector<16x96xf32>
    tpu.vector_store %arg7[%c0_6, %c0_7], %7 {strides = array<i32>} : memref<16x96xf32, #tpu.memory_space<vmem>>, vector<16x96xf32>,
    %c0_i32_8 = arith.constant 0 : i32
    %9 = arith.cmpi eq, %arg2, %c0_i32_8 : i32
    %10 = arith.extui %9 : i1 to i32
    %c0_i32_9 = arith.constant 0 : i32
    %11 = arith.cmpi ne, %10, %c0_i32_9 : i32
    scf.if %11 {
      %c0_10 = arith.constant 0 : index
      %c0_11 = arith.constant 0 : index
      %12 = vector.load %arg7[%c0_10, %c0_11] : memref<16x96xf32, #tpu.memory_space<vmem>>, vector<16x96xf32>
      %c0_12 = arith.constant 0 : index
      %c0_13 = arith.constant 0 : index
      %13 = vector.load %arg5[%c0_12, %c0_13] : memref<1x96xf32, #tpu.memory_space<vmem>>, vector<1x96xf32>
      %14 = vector.broadcast %13 : vector<1x96xf32> to vector<16x96xf32>
      %15 = arith.addf %12, %14 : vector<16x96xf32>
      %16 = arith.truncf %15 : vector<16x96xf32> to vector<16x96xbf16>
      %c0_14 = arith.constant 0 : index
      %c0_15 = arith.constant 0 : index
      %17 = vector.load %arg6[%c0_14, %c0_15] : memref<16x96xbf16, #tpu.memory_space<vmem>>, vector<16x96xbf16>
      tpu.vector_store %arg6[%c0_14, %c0_15], %16 {strides = array<i32>} : memref<16x96xbf16, #tpu.memory_space<vmem>>, vector<16x96xbf16>,
    } else {
    }
    return
  }
  func.func @transform_0(%arg0: i32, %arg1: i32, %arg2: i32) -> (i32, i32) {
    %c0_i32 = arith.constant 0 : i32
    return %arg0, %arg2 : i32, i32
  }
  func.func @transform_1(%arg0: i32, %arg1: i32, %arg2: i32) -> (i32, i32) {
    %c0_i32 = arith.constant 0 : i32
    return %arg2, %arg1 : i32, i32
  }
  func.func @transform_2(%arg0: i32, %arg1: i32, %arg2: i32) -> (i32, i32) {
    %c0_i32 = arith.constant 0 : i32
    %c0_i32_0 = arith.constant 0 : i32
    return %c0_i32, %arg1 : i32, i32
  }
  func.func @transform_3(%arg0: i32, %arg1: i32, %arg2: i32) -> (i32, i32) {
    %c0_i32 = arith.constant 0 : i32
    return %arg0, %arg1 : i32, i32
  }
}

</mosaic_0001>

<llo_original>
// kernel: tpu_custom_call.1
$region0: #{tpu_custom_call.1}
  #allocation0 [shape = 'u32[]', space=smem, size = 0x4, offset = 0x4, fixed_abs, tag = 'smem constant byte address 0x4 - core index']
  #allocation1 [shape = 'u32[72,128]{1,0:T(1,128)}', space=vmem, size = 0x9000, scoped, tag = 'internal scratch']
  #allocation2 [shape = 'f32[16,96]{1,0:T(8,128)}', space=vmem, size = 0x2000, scoped, tag = 'scratch operand']
  %s0 = inlined_call_operand.hbm [shape: bf16[16,32], index: 0, kind: input, shape index: {}]
  %s1 = inlined_call_operand.hbm [shape: bf16[32,96], index: 1, kind: input, shape index: {}]
  %s2 = inlined_call_operand.vmem [shape: f32[1,96], index: 2, kind: input, shape index: {}]
  %s3 = inlined_call_operand.hbm [shape: bf16[16,96], index: 3, kind: output, shape index: {}]
  %s4 = sld [smem:[#allocation0]]
  $region38: #{tpu_custom_call.1} parent=0
    _
  %s6 = ssub.s32 1, %s4
  %s7 = scalar_select 0, %s6, %s4
  $region1: #{tpu_custom_call.1} parent=0
    #allocation3 [shape = 'u8[4096]{0}', space=vmem, size = 0x1000, scoped, tag = 'input window, operand 0, single buffered']
    #allocation4 [shape = 's32[1]{0}', space=sflag, size = 0x4, scoped, tag = 'scoped memory for tpu_custom_call.1']
    #allocation5 [shape = 's32[1]{0}', space=sflag, size = 0x4, scoped, tag = 'scoped memory for tpu_custom_call.1']
    #allocation6 [shape = 'u8[8192]{0}', space=vmem, size = 0x2000, scoped, tag = 'input window, operand 1, single buffered']
    #allocation7 [shape = 's32[1]{0}', space=sflag, size = 0x4, scoped, tag = 'scoped memory for tpu_custom_call.1']
    #allocation8 [shape = 'u8[4096]{0}', space=vmem, size = 0x1000, scoped, tag = 'output window, operand 0, single buffered']
    %8 = vsyncpa [#allocation4], 0
    %9 = vsyncpa [#allocation7], 0
    %10 = vsyncpa [#allocation5], 0
    // Predicated region
    $region2: #{tpu_custom_call.1} parent=1 // pred_check
      _
    $region3: #{tpu_custom_call.1} parent=1 // pred_check_branch
      %12 = sbr.rel (0) target = $region5
    $region4: #{tpu_custom_call.1} parent=1 // pred_region
      %14 = vsyncadd [#allocation4], 0
      %s15 = sshll.u32 %s0, 4
      %s16 = int_to_ptr.hbm [resolvable:$true] %s15
      %s17 = sshll.u32 [#allocation3], 4
      %s18 = int_to_ptr.vmem [resolvable:$true] %s17
      %23 = dma.hbm_to_vmem [thread:$0]  %s16, 128, %s18, [#allocation4], 64, 64, 4
    $region5: #{tpu_custom_call.1} parent=1 // pred_fallthru
      _
    // Predicated region
    $region6: #{tpu_custom_call.1} parent=1 // pred_check
      _
    $region7: #{tpu_custom_call.1} parent=1 // pred_check_branch
      %25 = sbr.rel (0) target = $region9
    $region8: #{tpu_custom_call.1} parent=1 // pred_region
      %27 = vsyncadd [#allocation7], 0
      %s28 = sshll.u32 %s1, 4
      %s29 = int_to_ptr.hbm [resolvable:$true] %s28
      %s30 = sshll.u32 [#allocation6], 4
      %s31 = int_to_ptr.vmem [resolvable:$true] %s30
      %36 = dma.hbm_to_vmem [thread:$0]  %s29, 256, %s31, [#allocation7], 64, 64, 4
    $region9: #{tpu_custom_call.1} parent=1 // pred_fallthru
      _
    // Predicated region
    $region10: #{tpu_custom_call.1} parent=1 // pred_check
      _
    $region11: #{tpu_custom_call.1} parent=1 // pred_check_branch
      %38 = sbr.rel (0) target = $region13
    $region12: #{tpu_custom_call.1} parent=1 // pred_region
      _
    $region13: #{tpu_custom_call.1} parent=1 // pred_fallthru
      _
    // Predicated region
    $region14: #{tpu_custom_call.1} parent=1 // pred_check
      _
    $region15: #{tpu_custom_call.1} parent=1 // pred_check_branch
      %40 = sbr.rel (0) target = $region17
    $region16: #{tpu_custom_call.1} parent=1 // pred_region
      %42 = dma.done [#allocation4], 128
    $region17: #{tpu_custom_call.1} parent=1 // pred_fallthru
      _
    // Predicated region
    $region18: #{tpu_custom_call.1} parent=1 // pred_check
      _
    $region19: #{tpu_custom_call.1} parent=1 // pred_check_branch
      %44 = sbr.rel (0) target = $region21
    $region20: #{tpu_custom_call.1} parent=1 // pred_region
      %46 = dma.done [#allocation7], 256
    $region21: #{tpu_custom_call.1} parent=1 // pred_fallthru
      _
    %p48 = scmp.eq.s32.totalorder 0, 0
    // Predicated region
    $region22: #{tpu_custom_call.1} parent=1 // pred_check
      %p49 = pneg %p48
    $region23: #{tpu_custom_call.1} parent=1 // pred_check_branch
      %51 = sbr.rel (%p49) target = $region25
    $region24: #{tpu_custom_call.1} parent=1 // pred_region
      %vm52 = vcmask 785408
      %53 = vst.msk [vmem:[#allocation2] sm:$0xff] %vm52, 0.0
      %54 = vst.msk [vmem:[#allocation2 + $0x8] sm:$0xff] %vm52, 0.0
    $region25: #{tpu_custom_call.1} parent=1 // pred_fallthru
      _
    %v55 = vld [vmem:[#allocation2] sm:$0xff]
    %v56 = vld [vmem:[#allocation2 + $0x8] sm:$0xff]
    %v57 = vld [vmem:[#allocation3] sm:$0xf]
    %v58 = vld [vmem:[#allocation3 + $0x4] sm:$0xf]
    %v59 = vld [vmem:[#allocation6] sm:$0xf]
    %v60 = vld [vmem:[#allocation6 + $0x4] sm:$0xf]
    %v61 = vld [vmem:[#allocation6 + $0x8] sm:$0xf]
    %v62 = vld [vmem:[#allocation6 + $0xc] sm:$0xf]
    %v65 = vunpack.c.l.b16 %v57
    %v66 = vunpack.c.l.b16 %v58
    %v67 = vpack.c.b16 %v66, %v65
    %v72 = vunpack.c.l.b16 %v59
    %v73 = vunpack.c.l.b16 %v60
    %v74 = vunpack.c.l.b16 %v61
    %v75 = vunpack.c.l.b16 %v62
    %v76 = vpack.c.b16 %v73, %v72
    %v77 = vpack.c.b16 %v75, %v74
    %vm80 = vcmask 261120
    %v82 = vsel %vm80, %v67, 0
    %84 = vmatpush.bf16.msra.mxu0 0
    %85 = vmatpush.bf16.msra.mxu0 0
    %86 = vmatpush.bf16.msra.mxu0 0
    %87 = vmatpush.bf16.msra.mxu0 0
    %88 = vmatpush.bf16.msra.mxu0 0
    %89 = vmatpush.bf16.msra.mxu0 0
    %90 = vmatpush.bf16.msra.mxu0 %v77
    %91 = vmatpush.bf16.msra.mxu0 %v76
    %92 = vmatmul.bf16.gmra.mxu0 %v82
    %v93 = vpop.f32.mrf.mxu0
    %v94 = vadd.f32 0.0, %v93
    %v95 = vpop.f32.mrf.mxu0
    %v96 = vadd.f32 0.0, %v95
    %97 = vdwg.mxu0
    %v98 = vadd.f32 %v55, %v94
    %v99 = vadd.f32 %v56, %v96
    %vm100 = vcmask 785408
    %101 = vst.msk [vmem:[#allocation2] sm:$0xff] %vm100, %v98
    %102 = vst.msk [vmem:[#allocation2 + $0x8] sm:$0xff] %vm100, %v99
    // Predicated region
    $region26: #{tpu_custom_call.1} parent=1 // pred_check
      %p103 = pneg %p48
    $region27: #{tpu_custom_call.1} parent=1 // pred_check_branch
      %105 = sbr.rel (%p103) target = $region29
    $region28: #{tpu_custom_call.1} parent=1 // pred_region
      %v106 = vld [vmem:[#allocation2] sm:$0xff]
      %v107 = vld [vmem:[#allocation2 + $0x8] sm:$0xff]
      %v108 = vld [vmem:[%s2] sm:$0x1]
      %v110 = vperm.slane %v108, 0
      %v112 = vadd.f32 %v106, %v110
      %v113 = vadd.f32 %v107, %v110
      %v114 = vpack.c.bf16 %v112, %v112
      %v115 = vpack.c.bf16 %v113, %v113
      %vm116 = vcmask 781312
      %117 = vst.msk [vmem:[#allocation8] sm:$0xf] %vm116, %v114
      %118 = vst.msk [vmem:[#allocation8 + $0x4] sm:$0xf] %vm116, %v115
    $region29: #{tpu_custom_call.1} parent=1 // pred_fallthru
      _
    // Predicated region
    $region30: #{tpu_custom_call.1} parent=1 // pred_check
      _
    $region31: #{tpu_custom_call.1} parent=1 // pred_check_branch
      %120 = sbr.rel (0) target = $region33
    $region32: #{tpu_custom_call.1} parent=1 // pred_region
      %122 = vsyncadd [#allocation5], 0
      %s123 = sshll.u32 [#allocation8], 4
      %s124 = int_to_ptr.vmem [resolvable:$true] %s123
      %s125 = sshll.u32 %s3, 4
      %s126 = int_to_ptr.hbm [resolvable:$true] %s125
      %131 = dma.vmem_to_hbm [thread:$0]  %s124, 128, %s126, [#allocation5], 64, 64, 4
    $region33: #{tpu_custom_call.1} parent=1 // pred_fallthru
      _
    // Predicated region
    $region34: #{tpu_custom_call.1} parent=1 // pred_check
      _
    $region35: #{tpu_custom_call.1} parent=1 // pred_check_branch
      %133 = sbr.rel (0) target = $region37
    $region36: #{tpu_custom_call.1} parent=1 // pred_region
      %135 = dma.done [#allocation5], 128
    $region37: #{tpu_custom_call.1} parent=1 // pred_fallthru
      _
    %136 = vsyncpa [#allocation4], 1
    %137 = vsyncpa [#allocation7], 1
    %138 = vsyncpa [#allocation5], 1

</llo_original>
